<compile_context>
chip_gen: v7x
topology: tpu7x:2x2x1
jax: 0.10.0
libtpu: 0.0.40
codegen_flags: <defaults>
</compile_context>

<pallas_src>
import jax
import jax.numpy as jnp
from jax.experimental import pallas as pl
from jax.experimental.pallas import tpu as pltpu


def basic_block_kernel(xs_ref, w_ref, bias_ref, o_ref):
    """One row-tile of fused conv3x3 + BN + LeakyReLU(0.2) + residual add.

    xs_ref  : (tn, 9*Cin)       bf16  im2col patch rows
    w_ref   : (9*Cin, 2*Cout_p) bf16  [BN-folded conv weight | center-tap extractor]
    bias_ref: (1, Cout_p)       f32   folded BN bias (resident)
    o_ref   : (tn, Cout_p)      f32
    """
    cout_p = o_ref.shape[-1]
    # Single fused MXU matmul, contraction K = 9*Cin, f32 accumulation.
    y = jnp.dot(xs_ref[...], w_ref[...], preferred_element_type=jnp.float32)
    # Conv + folded BN bias, then LeakyReLU(negative_slope=0.2) on the VPU.
    z = y[:, :cout_p] + bias_ref[...]
    z = jnp.where(z > 0, z, 0.2 * z)
    # Residual = x at this pixel = center tap of the patch row (second half of the matmul).
    o_ref[...] = (y[:, cout_p:] + z).astype(o_ref.dtype)


def _round_up(x, m):
    return ((x + m - 1) // m) * m


def _pick_row_tile(n_rows, row_tile):
    """Keep the requested row tile, but guarantee >= 2 grid steps when N allows (megacore)."""
    if n_rows >= 2 * row_tile:
        return row_tile
    half = _round_up(-(-n_rows // 2), 128)
    return max(128, min(row_tile, half))


def basic_block_forward(x_nchw, conv_w, bn_gamma, bn_beta, bn_mean, bn_var,
                        stride=1, pad=1, dilation=1, eps=1e-5, row_tile=512):
    B, Cin, H, W = x_nchw.shape
    Cout = conv_w.shape[0]
    p = dilation if dilation > 1 else pad
    Ho = (H + 2 * p - dilation * 2 - 1) // stride + 1
    Wo = (W + 2 * p - dilation * 2 - 1) // stride + 1

    # downsample is None -> residual is x itself; requires a shape-preserving conv.
    assert stride == 1 and Cin == Cout and Ho == H and Wo == W, \
        "downsample=None path requires stride=1, Cin==Cout and a shape-preserving conv"

    N = B * Ho * Wo
    K = 9 * Cin
    cout_p = _round_up(Cout, 128)          # lane-dense output / weight columns

    # ---- glue (layout only, no FLOPs): im2col packed as (N, 9*Cin), bf16 ----
    x_nhwc = jnp.transpose(x_nchw, (0, 2, 3, 1))
    xp = jnp.pad(x_nhwc, ((0, 0), (p, p), (p, p), (0, 0)))
    wins = []
    for ky in range(3):
        for kx in range(3):
            sl = xp[:,
                    ky * dilation: ky * dilation + stride * (Ho - 1) + 1: stride,
                    kx * dilation: kx * dilation + stride * (Wo - 1) + 1: stride,
                    :]
            wins.append(sl.reshape(N, Cin))
    patches = jnp.concatenate(wins, axis=1).astype(jnp.bfloat16)        # (N, 9*Cin)

    # conv_w OIHW -> (ky, kx, Cin, Cout) -> (9*Cin, Cout); fold BN scale into the columns.
    scale = bn_gamma / jnp.sqrt(bn_var + eps)                           # (Cout,)
    w9 = jnp.transpose(conv_w, (2, 3, 1, 0)).reshape(K, Cout) * scale[None, :]
    w_conv = jnp.zeros((K, cout_p), jnp.float32).at[:, :Cout].set(w9)
    # Center-tap extractor: residual channel c is patch column 4*Cin + c.
    w_res = jnp.zeros((K, cout_p), jnp.float32).at[4 * Cin:5 * Cin, :Cout].set(
        jnp.eye(Cin, dtype=jnp.float32))
    # One combined weight -> a single MXU matmul per tile.
    w_cat = jnp.concatenate([w_conv, w_res], axis=1).astype(jnp.bfloat16)   # (K, 2*cout_p)
    bias = jnp.zeros((1, cout_p), jnp.float32).at[0, :Cout].set(bn_beta - bn_mean * scale)

    # ---- tiling: cdiv grid over (padded) rows ----
    tn = _pick_row_tile(N, row_tile)
    num_tiles = pl.cdiv(N, tn)
    n_pad = num_tiles * tn
    if n_pad != N:
        patches = jnp.pad(patches, ((0, n_pad - N), (0, 0)))
    grid = (num_tiles,)

    out_rows = pl.pallas_call(
        basic_block_kernel,
        out_shape=jax.ShapeDtypeStruct((n_pad, cout_p), jnp.float32),
        grid=grid,
        in_specs=[
            pl.BlockSpec((tn, K), lambda i: (i, 0)),            # im2col rows (bf16)
            pl.BlockSpec((K, 2 * cout_p), lambda i: (0, 0)),    # combined weight (resident)
            pl.BlockSpec((1, cout_p), lambda i: (0, 0)),        # folded BN bias (resident)
        ],
        out_specs=pl.BlockSpec((tn, cout_p), lambda i: (i, 0)),
        compiler_params=pltpu.CompilerParams(
            dimension_semantics=("parallel",),
        ),
    )(patches, w_cat, bias)

    out = out_rows[:N, :Cout].reshape(B, Ho, Wo, Cout).astype(x_nchw.dtype)
    return jnp.transpose(out, (0, 3, 1, 2))                              # back to NCHW


def reference_forward(x, w, gamma, beta, mean, var, stride=1, pad=1, dilation=1, eps=1e-5):
    """Pure-JAX reference matching the PyTorch BasicBlock (eval-mode BN, downsample=None)."""
    p = dilation if dilation > 1 else pad
    y = jax.lax.conv_general_dilated(
        x, w, window_strides=(stride, stride), padding=((p, p), (p, p)),
        rhs_dilation=(dilation, dilation),
        dimension_numbers=('NCHW', 'OIHW', 'NCHW'))
    scale = gamma / jnp.sqrt(var + eps)
    y = y * scale[None, :, None, None] + (beta - mean * scale)[None, :, None, None]
    y = jnp.where(y > 0, y, 0.2 * y)
    return x + y


if __name__ == "__main__":
    key = jax.random.PRNGKey(0)
    k_x, k_w, k_g, k_b, k_m, k_v = jax.random.split(key, 6)

    B, C, H, W = 2, 4, 16, 16      # in_channel = out_channel = 4, stride=1, pad=1, dilation=1
    x = jax.random.normal(k_x, (B, C, H, W), jnp.float32)

    # Deterministic synthetic parameters (no checkpoint).
    conv_w = 0.1 * jax.random.normal(k_w, (C, C, 3, 3), jnp.float32)   # OIHW, bias=False
    bn_gamma = 1.0 + 0.1 * jax.random.normal(k_g, (C,), jnp.float32)
    bn_beta = 0.1 * jax.random.normal(k_b, (C,), jnp.float32)
    bn_mean = 0.1 * jax.random.normal(k_m, (C,), jnp.float32)
    bn_var = 1.0 + 0.1 * jax.random.uniform(k_v, (C,), jnp.float32)

    out = basic_block_forward(x, conv_w, bn_gamma, bn_beta, bn_mean, bn_var,
                              stride=1, pad=1, dilation=1)
    out = jax.block_until_ready(out)

    ref = reference_forward(x, conv_w, bn_gamma, bn_beta, bn_mean, bn_var)
    assert out.shape == ref.shape == (B, C, H, W)
    # bf16 matmul operands (f32 accumulation) -> loosened tolerance vs. the f32 reference.
    assert jnp.allclose(out, ref, atol=5e-2, rtol=5e-2), "mismatch vs reference"

    print("KERNEL_OK")
</pallas_src>

<mosaic_0001>
module attributes {stable_mosaic.version = 11 : i64} {
  func.func @basic_block_kernel(%arg0: i32, %arg1: memref<256x36xbf16, #tpu.memory_space<vmem>>, %arg2: memref<36x256xbf16, #tpu.memory_space<vmem>>, %arg3: memref<1x128xf32, #tpu.memory_space<vmem>>, %arg4: memref<256x128xf32, #tpu.memory_space<vmem>>) attributes {dimension_semantics = [#tpu.dimension_semantics<parallel>], iteration_bounds = array<i64: 2>, scalar_prefetch = 0 : i64, scratch_operands = 0 : i64, tpu.core_type = #tpu.core_type<tc>, window_params = [{transform_indices = @transform_0, window_bounds = array<i64: 256, 36>}, {pipeline_mode = #tpu.pipeline_mode<synchronous>, transform_indices = @transform_1, window_bounds = array<i64: 36, 256>}, {pipeline_mode = #tpu.pipeline_mode<synchronous>, transform_indices = @transform_2, window_bounds = array<i64: 1, 128>}, {transform_indices = @transform_3, window_bounds = array<i64: 256, 128>}]} {
    %c0 = arith.constant 0 : index
    %c0_0 = arith.constant 0 : index
    %0 = vector.load %arg1[%c0, %c0_0] : memref<256x36xbf16, #tpu.memory_space<vmem>>, vector<256x36xbf16>
    %c0_1 = arith.constant 0 : index
    %c0_2 = arith.constant 0 : index
    %1 = vector.load %arg2[%c0_1, %c0_2] : memref<36x256xbf16, #tpu.memory_space<vmem>>, vector<36x256xbf16>
    %cst = arith.constant dense<0.000000e+00> : vector<256x256xf32>
    %2 = tpu.matmul %0, %1, %cst {dimension_numbers = #tpu.dot_dimension_numbers<[1], [0], [0], [1], [0, 0, 1, 1], [], []>} : vector<256x36xbf16>, vector<36x256xbf16>, vector<256x256xf32> -> vector<256x256xf32>
    %3 = vector.extract_strided_slice %2 {offsets = [0, 0], sizes = [256, 128], strides = [1, 1]} : vector<256x256xf32> to vector<256x128xf32>
    %c0_3 = arith.constant 0 : index
    %c0_4 = arith.constant 0 : index
    %4 = vector.load %arg3[%c0_3, %c0_4] : memref<1x128xf32, #tpu.memory_space<vmem>>, vector<1x128xf32>
    %5 = vector.broadcast %4 : vector<1x128xf32> to vector<256x128xf32>
    %6 = arith.addf %3, %5 : vector<256x128xf32>
    %cst_5 = arith.constant 0.000000e+00 : f32
    %7 = vector.broadcast %cst_5 : f32 to vector<256x128xf32>
    %8 = arith.cmpf ogt, %6, %7 : vector<256x128xf32>
    %cst_6 = arith.constant 2.000000e-01 : f32
    %9 = vector.broadcast %cst_6 : f32 to vector<256x128xf32>
    %10 = arith.mulf %9, %6 : vector<256x128xf32>
    %11 = arith.select %8, %6, %10 : vector<256x128xi1>, vector<256x128xf32>
    %12 = vector.extract_strided_slice %2 {offsets = [0, 128], sizes = [256, 128], strides = [1, 1]} : vector<256x256xf32> to vector<256x128xf32>
    %13 = arith.addf %12, %11 : vector<256x128xf32>
    %c0_7 = arith.constant 0 : index
    %c0_8 = arith.constant 0 : index
    %14 = vector.load %arg4[%c0_7, %c0_8] : memref<256x128xf32, #tpu.memory_space<vmem>>, vector<256x128xf32>
    tpu.vector_store %arg4[%c0_7, %c0_8], %13 {strides = array<i32>} : memref<256x128xf32, #tpu.memory_space<vmem>>, vector<256x128xf32>,
    return
  }
  func.func @transform_0(%arg0: i32) -> (i32, i32) {
    %c0_i32 = arith.constant 0 : i32
    %c0_i32_0 = arith.constant 0 : i32
    return %arg0, %c0_i32 : i32, i32
  }
  func.func @transform_1(%arg0: i32) -> (i32, i32) {
    %c0_i32 = arith.constant 0 : i32
    %c0_i32_0 = arith.constant 0 : i32
    %c0_i32_1 = arith.constant 0 : i32
    return %c0_i32, %c0_i32_0 : i32, i32
  }
  func.func @transform_2(%arg0: i32) -> (i32, i32) {
    %c0_i32 = arith.constant 0 : i32
    %c0_i32_0 = arith.constant 0 : i32
    %c0_i32_1 = arith.constant 0 : i32
    return %c0_i32, %c0_i32_0 : i32, i32
  }
  func.func @transform_3(%arg0: i32) -> (i32, i32) {
    %c0_i32 = arith.constant 0 : i32
    %c0_i32_0 = arith.constant 0 : i32
    return %arg0, %c0_i32 : i32, i32
  }
}

</mosaic_0001>

<llo_original>
// kernel: tpu_custom_call.1
$region0: #{tpu_custom_call.1}
  #allocation0 [shape = 'u32[]', space=smem, size = 0x4, offset = 0x4, fixed_abs, tag = 'smem constant byte address 0x4 - core index']
  #allocation1 [shape = 'u32[144,128]{1,0:T(1,128)}', space=vmem, size = 0x12000, scoped, tag = 'internal scratch']
  %s0 = inlined_call_operand.vmem [shape: bf16[512,36], index: 0, kind: input, shape index: {}]
  %s1 = inlined_call_operand.vmem [shape: bf16[36,256], index: 1, kind: input, shape index: {}]
  %s2 = inlined_call_operand.vmem [shape: f32[1,128], index: 2, kind: input, shape index: {}]
  %s3 = inlined_call_operand.hbm [shape: f32[512,128], index: 3, kind: output, shape index: {}]
  %s4 = sld [smem:[#allocation0]]
  $region45: #{tpu_custom_call.1} parent=0
    _
  %s6 = ssub.s32 1, %s4
  %s7 = scalar_select 0, %s6, %s4
  $region1: #{tpu_custom_call.1} parent=0
    #allocation2 [shape = 'u8[262144]{0}', space=vmem, size = 0x40000, scoped, tag = 'output window, operand 0']
    #allocation3 [shape = 's32[2]{0}', space=sflag, size = 0x8, scoped, tag = 'scoped memory for tpu_custom_call.1']
    %8 = vsyncpa [#allocation3], 0
    %s9 = scalar_lea.sflag [#allocation3], 1
    %10 = vsyncpa %s9, 0
    loop: start=0, step=1, limit=4
    $region2: #{tpu_custom_call.1} parent=1 // loop_pre_header
      _
    $region3: #{tpu_custom_call.1} parent=1 // loop_header
      %s12 = sphi 0, %s16
      %p13 = scmp.ge.s32.totalorder %s12, 4
      %s22 = sphi 0, %s24
      %s25 = sphi 0, %s22
      %s26 = sphi 0, %s25
      %s42 = sphi 0, %s26
      %s46 = sphi 0, %s46
      %s48 = sphi 0, %s46
      %s49 = sphi 0, %s48
      %s63 = sphi 0, %s49
      %s67 = sphi 0, %s67
      %s69 = sphi 0, %s67
      %s70 = sphi 0, %s69
      %s84 = sphi 0, %s70
      %s90 = sphi 0, %s92
      %s93 = sphi 0, %s90
      %s94 = sphi 0, %s93
      %s110 = sphi 0, %s94
    $region4: #{tpu_custom_call.1} parent=1 // loop_header_branch
      %15 = sbr.rel (%p13) target = $region8
    $region5: #{tpu_custom_call.1} parent=1 // loop_body
      %s17 = ssub.s32 %s12, 1
      %s18 = ssub.s32 %s12, 2
      %s19 = sadd.s32 %s12, 1
      %s20 = ssub.s32 %s12, %s19
      %p21 = scmp.eq.s32.totalorder %s20, 0
      %s23 = sadd.s32 %s22, 1
      %s24 = scalar_select %p21, %s22, %s23
      %p27 = pneg %p21
      %p28 = scmp.eq.s32.totalorder %s12, 1
      %p29 = por %p27, %p28
      %p30 = scmp.ne.s32.totalorder %s22, %s25
      %p31 = scmp.eq.s32.totalorder %s12, 0
      %p32 = por %p30, %p31
      %p33 = scmp.ne.s32.totalorder %s22, %s25
      %p34 = scmp.eq.s32.totalorder %s17, 1
      %p35 = por %p33, %p34
      %p36 = scmp.ne.s32.totalorder %s25, %s26
      %p37 = scmp.eq.s32.totalorder %s17, 0
      %p38 = por %p36, %p37
      %p39 = scmp.ne.s32.totalorder %s25, %s26
      %p40 = scmp.eq.s32.totalorder %s18, 1
      %p41 = por %p39, %p40
      %p43 = scmp.ne.s32.totalorder %s26, %s42
      %p44 = scmp.eq.s32.totalorder %s18, 0
      %p45 = por %p43, %p44
      %s47 = sadd.s32 %s46, 1
      %p50 = scmp.eq.s32.totalorder %s12, 1
      %p51 = scmp.ne.s32.totalorder %s46, %s48
      %p52 = scmp.eq.s32.totalorder %s12, 0
      %p53 = por %p51, %p52
      %p54 = scmp.ne.s32.totalorder %s46, %s48
      %p55 = scmp.eq.s32.totalorder %s17, 1
      %p56 = por %p54, %p55
      %p57 = scmp.ne.s32.totalorder %s48, %s49
      %p58 = scmp.eq.s32.totalorder %s17, 0
      %p59 = por %p57, %p58
      %p60 = scmp.ne.s32.totalorder %s48, %s49
      %p61 = scmp.eq.s32.totalorder %s18, 1
      %p62 = por %p60, %p61
      %p64 = scmp.ne.s32.totalorder %s49, %s63
      %p65 = scmp.eq.s32.totalorder %s18, 0
      %p66 = por %p64, %p65
      %s68 = sadd.s32 %s67, 1
      %p71 = scmp.eq.s32.totalorder %s12, 1
      %p72 = scmp.ne.s32.totalorder %s67, %s69
      %p73 = scmp.eq.s32.totalorder %s12, 0
      %p74 = por %p72, %p73
      %p75 = scmp.ne.s32.totalorder %s67, %s69
      %p76 = scmp.eq.s32.totalorder %s17, 1
      %p77 = por %p75, %p76
      %p78 = scmp.ne.s32.totalorder %s69, %s70
      %p79 = scmp.eq.s32.totalorder %s17, 0
      %p80 = por %p78, %p79
      %p81 = scmp.ne.s32.totalorder %s69, %s70
      %p82 = scmp.eq.s32.totalorder %s18, 1
      %p83 = por %p81, %p82
      %p85 = scmp.ne.s32.totalorder %s70, %s84
      %p86 = scmp.eq.s32.totalorder %s18, 0
      %p87 = por %p85, %p86
      %s88 = ssub.s32 %s12, %s19
      %p89 = scmp.eq.s32.totalorder %s88, 0
      %s91 = sadd.s32 %s90, 1
      %s92 = scalar_select %p89, %s90, %s91
      %p95 = pneg %p89
      %p96 = scmp.eq.s32.totalorder %s12, 1
      %p97 = por %p95, %p96
      %p98 = scmp.ne.s32.totalorder %s90, %s93
      %p99 = scmp.eq.s32.totalorder %s12, 0
      %p100 = por %p98, %p99
      %p101 = scmp.ne.s32.totalorder %s90, %s93
      %p102 = scmp.eq.s32.totalorder %s17, 1
      %p103 = por %p101, %p102
      %p104 = scmp.ne.s32.totalorder %s93, %s94
      %p105 = scmp.eq.s32.totalorder %s17, 0
      %p106 = por %p104, %p105
      %p107 = scmp.ne.s32.totalorder %s93, %s94
      %p108 = scmp.eq.s32.totalorder %s18, 1
      %p109 = por %p107, %p108
      %p111 = scmp.ne.s32.totalorder %s94, %s110
      %p112 = scmp.eq.s32.totalorder %s18, 0
      %p113 = por %p111, %p112
      %p114 = scmp.le.s32.totalorder 1, %s12
      %p115 = scmp.lt.s32.totalorder %s12, 3
      %p116 = pnand %p114, %p115
      %p117 = pneg %p116
      // Predicated region
      $region9: #{tpu_custom_call.1} parent=5 // pred_check
        _
      $region10: #{tpu_custom_call.1} parent=5 // pred_check_branch
        %119 = sbr.rel (%p116) target = $region12
      $region11: #{tpu_custom_call.1} parent=5 // pred_region
        %s120 = ssub.s32 %s12, 1
        // Predicated region
        $region13: #{tpu_custom_call.1} parent=11 // pred_check
          %p121 = pneg %p59
        $region14: #{tpu_custom_call.1} parent=11 // pred_check_branch
          %123 = sbr.rel (%p121) target = $region16
        $region15: #{tpu_custom_call.1} parent=11 // pred_region
          _
        $region16: #{tpu_custom_call.1} parent=11 // pred_fallthru
          _
        // Predicated region
        $region17: #{tpu_custom_call.1} parent=11 // pred_check
          %p124 = pneg %p80
        $region18: #{tpu_custom_call.1} parent=11 // pred_check_branch
          %126 = sbr.rel (%p124) target = $region20
        $region19: #{tpu_custom_call.1} parent=11 // pred_region
          _
        $region20: #{tpu_custom_call.1} parent=11 // pred_fallthru
          _
      $region12: #{tpu_custom_call.1} parent=5 // pred_fallthru
        _
      %p127 = scmp.lt.s32.totalorder %s12, 2
      // Predicated region
      $region21: #{tpu_custom_call.1} parent=5 // pred_check
        %p128 = pneg %p127
      $region22: #{tpu_custom_call.1} parent=5 // pred_check_branch
        %130 = sbr.rel (%p128) target = $region24
      $region23: #{tpu_custom_call.1} parent=5 // pred_region
        // Predicated region
        $region25: #{tpu_custom_call.1} parent=23 // pred_check
          %p131 = pneg %p32
        $region26: #{tpu_custom_call.1} parent=23 // pred_check_branch
          %133 = sbr.rel (%p131) target = $region28
        $region27: #{tpu_custom_call.1} parent=23 // pred_region
          %s134 = smul.u32 32, %s12
          %p135 = scmp.lt.s32.totalorder %s134, 63
          %s136 = scalar_select %p135, %s134, 63
          %s137 = smul.addr %s136, 4
          %s138 = scalar_lea.vmem %s0, %s137
          %s139 = smul.u32 32, %s12
        $region28: #{tpu_custom_call.1} parent=23 // pred_fallthru
          _
      $region24: #{tpu_custom_call.1} parent=5 // pred_fallthru
        _
      %p140 = scmp.le.s32.totalorder 1, %s12
      %p141 = scmp.lt.s32.totalorder %s12, 3
      %p142 = pnand %p140, %p141
      %p143 = pneg %p142
      // Predicated region
      $region29: #{tpu_custom_call.1} parent=5 // pred_check
        _
      $region30: #{tpu_custom_call.1} parent=5 // pred_check_branch
        %145 = sbr.rel (%p142) target = $region32
      $region31: #{tpu_custom_call.1} parent=5 // pred_region
        %s146 = ssub.s32 %s12, 1
        %s147 = smul.u32 32, %s17
        %p148 = scmp.lt.s32.totalorder %s147, 63
        %s149 = scalar_select %p148, %s147, 63
        %s150 = smul.addr %s149, 4
        %s151 = scalar_lea.vmem %s0, %s150
        %p152 = pneg %p38
        %p153 = pneg %p35
        %p154 = pneg %p59
        %p155 = pneg %p56
        %p156 = pneg %p80
        %p157 = pneg %p77
        %p158 = pneg %p106
        %p159 = pneg %p103
        %s160 = sand.u32 %s93, 1
        %s161 = scalar_lea.sflag [#allocation3], %s160
        %s162 = sand.u32 %s93, 1
        %s163 = smul.addr %s162, 256
        %s164 = scalar_lea.vmem [#allocation2], %s163
        %s165 = smul.u32 32, %s17
        %p166 = scmp.lt.s32.totalorder %s165, 63
        %s167 = scalar_select %p166, %s165, 63
        %s168 = smul.addr %s167, 4
        %s169 = scalar_lea.vmem %s0, %s168
        %s170 = smul.u32 32, %s17
        %s171 = smul.u32 32, %s17
        %v173 = vld [vmem:[%s169] sm:$0xf]
        %v174 = vld [vmem:[%s169 + $0x4] sm:$0xf]
        %v175 = vld [vmem:[%s169 + $0x8] sm:$0xf]
        %v176 = vld [vmem:[%s169 + $0xc] sm:$0xf]
        %v177 = vld [vmem:[%s169 + $0x10] sm:$0xf]
        %v178 = vld [vmem:[%s169 + $0x14] sm:$0xf]
        %v179 = vld [vmem:[%s169 + $0x18] sm:$0xf]
        %v180 = vld [vmem:[%s169 + $0x1c] sm:$0xf]
        %v181 = vld [vmem:[%s169 + $0x20] sm:$0xf]
        %v182 = vld [vmem:[%s169 + $0x24] sm:$0xf]
        %v183 = vld [vmem:[%s169 + $0x28] sm:$0xf]
        %v184 = vld [vmem:[%s169 + $0x2c] sm:$0xf]
        %v185 = vld [vmem:[%s169 + $0x30] sm:$0xf]
        %v186 = vld [vmem:[%s169 + $0x34] sm:$0xf]
        %v187 = vld [vmem:[%s169 + $0x38] sm:$0xf]
        %v188 = vld [vmem:[%s169 + $0x3c] sm:$0xf]
        %v189 = vld [vmem:[%s169 + $0x40] sm:$0xf]
        %v190 = vld [vmem:[%s169 + $0x44] sm:$0xf]
        %v191 = vld [vmem:[%s169 + $0x48] sm:$0xf]
        %v192 = vld [vmem:[%s169 + $0x4c] sm:$0xf]
        %v193 = vld [vmem:[%s169 + $0x50] sm:$0xf]
        %v194 = vld [vmem:[%s169 + $0x54] sm:$0xf]
        %v195 = vld [vmem:[%s169 + $0x58] sm:$0xf]
        %v196 = vld [vmem:[%s169 + $0x5c] sm:$0xf]
        %v197 = vld [vmem:[%s169 + $0x60] sm:$0xf]
        %v198 = vld [vmem:[%s169 + $0x64] sm:$0xf]
        %v199 = vld [vmem:[%s169 + $0x68] sm:$0xf]
        %v200 = vld [vmem:[%s169 + $0x6c] sm:$0xf]
        %v201 = vld [vmem:[%s169 + $0x70] sm:$0xf]
        %v202 = vld [vmem:[%s169 + $0x74] sm:$0xf]
        %v203 = vld [vmem:[%s169 + $0x78] sm:$0xf]
        %v204 = vld [vmem:[%s169 + $0x7c] sm:$0xf]
        %v205 = vld [vmem:[%s1] sm:$0xff]
        %v206 = vld [vmem:[%s1 + $0x8] sm:$0xff]
        %v207 = vld [vmem:[%s1 + $0x10] sm:$0xff]
        %v208 = vld [vmem:[%s1 + $0x18] sm:$0xff]
        %v209 = vld [vmem:[%s1 + $0x20] sm:$0x33]
        %v242 = vunpack.c.l.b16 %v173
        %v243 = vunpack.c.l.b16 %v174
        %v244 = vunpack.c.l.b16 %v175
        %v245 = vunpack.c.l.b16 %v176
        %v246 = vunpack.c.l.b16 %v177
        %v247 = vunpack.c.l.b16 %v178
        %v248 = vunpack.c.l.b16 %v179
        %v249 = vunpack.c.l.b16 %v180
        %v250 = vunpack.c.l.b16 %v181
        %v251 = vunpack.c.l.b16 %v182
        %v252 = vunpack.c.l.b16 %v183
        %v253 = vunpack.c.l.b16 %v184
        %v254 = vunpack.c.l.b16 %v185
        %v255 = vunpack.c.l.b16 %v186
        %v256 = vunpack.c.l.b16 %v187
        %v257 = vunpack.c.l.b16 %v188
        %v258 = vunpack.c.l.b16 %v189
        %v259 = vunpack.c.l.b16 %v190
        %v260 = vunpack.c.l.b16 %v191
        %v261 = vunpack.c.l.b16 %v192
        %v262 = vunpack.c.l.b16 %v193
        %v263 = vunpack.c.l.b16 %v194
        %v264 = vunpack.c.l.b16 %v195
        %v265 = vunpack.c.l.b16 %v196
        %v266 = vunpack.c.l.b16 %v197
        %v267 = vunpack.c.l.b16 %v198
        %v268 = vunpack.c.l.b16 %v199
        %v269 = vunpack.c.l.b16 %v200
        %v270 = vunpack.c.l.b16 %v201
        %v271 = vunpack.c.l.b16 %v202
        %v272 = vunpack.c.l.b16 %v203
        %v273 = vunpack.c.l.b16 %v204
        %v274 = vpack.c.b16 %v243, %v242
        %v275 = vpack.c.b16 %v245, %v244
        %v276 = vpack.c.b16 %v247, %v246
        %v277 = vpack.c.b16 %v249, %v248
        %v278 = vpack.c.b16 %v251, %v250
        %v279 = vpack.c.b16 %v253, %v252
        %v280 = vpack.c.b16 %v255, %v254
        %v281 = vpack.c.b16 %v257, %v256
        %v282 = vpack.c.b16 %v259, %v258
        %v283 = vpack.c.b16 %v261, %v260
        %v284 = vpack.c.b16 %v263, %v262
        %v285 = vpack.c.b16 %v265, %v264
        %v286 = vpack.c.b16 %v267, %v266
        %v287 = vpack.c.b16 %v269, %v268
        %v288 = vpack.c.b16 %v271, %v270
        %v289 = vpack.c.b16 %v273, %v272
        %v295 = vunpack.c.l.b16 %v205
        %v296 = vunpack.c.h.b16 %v205
        %v297 = vunpack.c.l.b16 %v206
        %v298 = vunpack.c.h.b16 %v206
        %v299 = vunpack.c.l.b16 %v207
        %v300 = vunpack.c.h.b16 %v207
        %v301 = vunpack.c.l.b16 %v208
        %v302 = vunpack.c.h.b16 %v208
        %v303 = vunpack.c.l.b16 %v209
        %v304 = vunpack.c.h.b16 %v209
        %v305 = vpack.c.b16 %v297, %v295
        %v306 = vpack.c.b16 %v298, %v296
        %v307 = vpack.c.b16 %v301, %v299
        %v308 = vpack.c.b16 %v302, %v300
        %v309 = vpack.c.b16 %v303, %v303
        %v310 = vpack.c.b16 %v304, %v304
        %vm315 = vcmask 293888
        %v317 = vsel %vm315, %v274, 0
        %v320 = vsel %vm315, %v275, 0
        %v323 = vsel %vm315, %v276, 0
        %v326 = vsel %vm315, %v277, 0
        %v329 = vsel %vm315, %v278, 0
        %v332 = vsel %vm315, %v279, 0
        %v335 = vsel %vm315, %v280, 0
        %v338 = vsel %vm315, %v281, 0
        %v341 = vsel %vm315, %v282, 0
        %v344 = vsel %vm315, %v283, 0
        %v347 = vsel %vm315, %v284, 0
        %v350 = vsel %vm315, %v285, 0
        %v353 = vsel %vm315, %v286, 0
        %v356 = vsel %vm315, %v287, 0
        %v359 = vsel %vm315, %v288, 0
        %v362 = vsel %vm315, %v289, 0
        %vm364 = vcmask 1041408
        %v366 = vsel %vm364, %v309, 0
        %v369 = vsel %vm364, %v310, 0
        %371 = vmatprep.subr.bf16.mxu0 %v306
        %372 = vmatpush1.bf16.msra.mxu0 %v305
        %373 = vmatprep.subr.bf16.mxu0 %v308
        %374 = vmatpush1.bf16.msra.mxu0 %v307
        %375 = vmatprep.subr.bf16.mxu0 %v369
        %376 = vmatpush1.bf16.msra.mxu0 %v366
        %377 = vmatprep.subr.bf16.mxu0 0
        %378 = vmatpush1.bf16.msra.mxu0 0
        %379 = vmatprep.subr.bf16.mxu0 0
        %380 = vmatpush1.bf16.msra.mxu0 0
        %381 = vmatprep.subr.bf16.mxu0 0
        %382 = vmatpush1.bf16.msra.mxu0 0
        %383 = vmatprep.subr.bf16.mxu0 0
        %384 = vmatpush1.bf16.msra.mxu0 0
        %385 = vmatprep.subr.bf16.mxu0 0
        %386 = vmatpush1.bf16.msra.mxu0 0
        %387 = vmatprep.subr.bf16.mxu0 0
        %388 = vmatpush1.bf16.msra.mxu0 0
        %389 = vmatprep.subr.bf16.mxu0 0
        %390 = vmatpush1.bf16.msra.mxu0 0
        %391 = vmatprep.subr.bf16.mxu0 0
        %392 = vmatpush1.bf16.msra.mxu0 0
        %393 = vmatprep.subr.bf16.mxu0 0
        %394 = vmatpush1.bf16.msra.mxu0 0
        %395 = vmatprep.subr.bf16.mxu0 0
        %396 = vmatpush1.bf16.msra.mxu0 0
        %397 = vmatprep.subr.bf16.mxu0 0
        %398 = vmatpush1.bf16.msra.mxu0 0
        %399 = vmatprep.subr.bf16.mxu0 0
        %400 = vmatpush1.bf16.msra.mxu0 0
        %401 = vmatprep.subr.bf16.mxu0 0
        %402 = vmatpush1.bf16.msra.mxu0 0
        %403 = vmatprep.mubr.bf16.mxu0 0
        %404 = vmatmul.mubr.bf16.gmra.mrb[0].mxu0 %v317
        %v405 = vpop.f32.mrb[0].mxu0
        %v406 = vadd.f32 0.0, %v405
        %v407 = vpop.f32.mrb[0].mxu0
        %v408 = vadd.f32 0.0, %v407
        %v409 = vpop.f32.mrb[0].mxu0
        %v410 = vadd.f32 0.0, %v409
        %v411 = vpop.f32.mrb[0].mxu0
        %v412 = vadd.f32 0.0, %v411
        %413 = vmatprep.mubr.bf16.mxu0 0
        %414 = vmatmul.mubr.bf16.gmra.mrb[0].mxu0 %v320
        %v415 = vpop.f32.mrb[0].mxu0
        %v416 = vadd.f32 0.0, %v415
        %v417 = vpop.f32.mrb[0].mxu0
        %v418 = vadd.f32 0.0, %v417
        %v419 = vpop.f32.mrb[0].mxu0
        %v420 = vadd.f32 0.0, %v419
        %v421 = vpop.f32.mrb[0].mxu0
        %v422 = vadd.f32 0.0, %v421
        %423 = vmatprep.mubr.bf16.mxu0 0
        %424 = vmatmul.mubr.bf16.gmra.mrb[0].mxu0 %v323
        %v425 = vpop.f32.mrb[0].mxu0
        %v426 = vadd.f32 0.0, %v425
        %v427 = vpop.f32.mrb[0].mxu0
        %v428 = vadd.f32 0.0, %v427
        %v429 = vpop.f32.mrb[0].mxu0
        %v430 = vadd.f32 0.0, %v429
        %v431 = vpop.f32.mrb[0].mxu0
        %v432 = vadd.f32 0.0, %v431
        %433 = vmatprep.mubr.bf16.mxu0 0
        %434 = vmatmul.mubr.bf16.gmra.mrb[0].mxu0 %v326
        %v435 = vpop.f32.mrb[0].mxu0
        %v436 = vadd.f32 0.0, %v435
        %v437 = vpop.f32.mrb[0].mxu0
        %v438 = vadd.f32 0.0, %v437
        %v439 = vpop.f32.mrb[0].mxu0
        %v440 = vadd.f32 0.0, %v439
        %v441 = vpop.f32.mrb[0].mxu0
        %v442 = vadd.f32 0.0, %v441
        %443 = vmatprep.mubr.bf16.mxu0 0
        %444 = vmatmul.mubr.bf16.gmra.mrb[0].mxu0 %v329
        %v445 = vpop.f32.mrb[0].mxu0
        %v446 = vadd.f32 0.0, %v445
        %v447 = vpop.f32.mrb[0].mxu0
        %v448 = vadd.f32 0.0, %v447
        %v449 = vpop.f32.mrb[0].mxu0
        %v450 = vadd.f32 0.0, %v449
        %v451 = vpop.f32.mrb[0].mxu0
        %v452 = vadd.f32 0.0, %v451
        %453 = vmatprep.mubr.bf16.mxu0 0
        %454 = vmatmul.mubr.bf16.gmra.mrb[0].mxu0 %v332
        %v455 = vpop.f32.mrb[0].mxu0
        %v456 = vadd.f32 0.0, %v455
        %v457 = vpop.f32.mrb[0].mxu0
        %v458 = vadd.f32 0.0, %v457
        %v459 = vpop.f32.mrb[0].mxu0
        %v460 = vadd.f32 0.0, %v459
        %v461 = vpop.f32.mrb[0].mxu0
        %v462 = vadd.f32 0.0, %v461
        %463 = vmatprep.mubr.bf16.mxu0 0
        %464 = vmatmul.mubr.bf16.gmra.mrb[0].mxu0 %v335
        %v465 = vpop.f32.mrb[0].mxu0
        %v466 = vadd.f32 0.0, %v465
        %v467 = vpop.f32.mrb[0].mxu0
        %v468 = vadd.f32 0.0, %v467
        %v469 = vpop.f32.mrb[0].mxu0
        %v470 = vadd.f32 0.0, %v469
        %v471 = vpop.f32.mrb[0].mxu0
        %v472 = vadd.f32 0.0, %v471
        %473 = vmatprep.mubr.bf16.mxu0 0
        %474 = vmatmul.mubr.bf16.gmra.mrb[0].mxu0 %v338
        %v475 = vpop.f32.mrb[0].mxu0
        %v476 = vadd.f32 0.0, %v475
        %v477 = vpop.f32.mrb[0].mxu0
        %v478 = vadd.f32 0.0, %v477
        %v479 = vpop.f32.mrb[0].mxu0
        %v480 = vadd.f32 0.0, %v479
        %v481 = vpop.f32.mrb[0].mxu0
        %v482 = vadd.f32 0.0, %v481
        %483 = vmatprep.mubr.bf16.mxu0 0
        %484 = vmatmul.mubr.bf16.gmra.mrb[0].mxu0 %v341
        %v485 = vpop.f32.mrb[0].mxu0
        %v486 = vadd.f32 0.0, %v485
        %v487 = vpop.f32.mrb[0].mxu0
        %v488 = vadd.f32 0.0, %v487
        %v489 = vpop.f32.mrb[0].mxu0
        %v490 = vadd.f32 0.0, %v489
        %v491 = vpop.f32.mrb[0].mxu0
        %v492 = vadd.f32 0.0, %v491
        %493 = vmatprep.mubr.bf16.mxu0 0
        %494 = vmatmul.mubr.bf16.gmra.mrb[0].mxu0 %v344
        %v495 = vpop.f32.mrb[0].mxu0
        %v496 = vadd.f32 0.0, %v495
        %v497 = vpop.f32.mrb[0].mxu0
        %v498 = vadd.f32 0.0, %v497
        %v499 = vpop.f32.mrb[0].mxu0
        %v500 = vadd.f32 0.0, %v499
        %v501 = vpop.f32.mrb[0].mxu0
        %v502 = vadd.f32 0.0, %v501
        %503 = vmatprep.mubr.bf16.mxu0 0
        %504 = vmatmul.mubr.bf16.gmra.mrb[0].mxu0 %v347
        %v505 = vpop.f32.mrb[0].mxu0
        %v506 = vadd.f32 0.0, %v505
        %v507 = vpop.f32.mrb[0].mxu0
        %v508 = vadd.f32 0.0, %v507
        %v509 = vpop.f32.mrb[0].mxu0
        %v510 = vadd.f32 0.0, %v509
        %v511 = vpop.f32.mrb[0].mxu0
        %v512 = vadd.f32 0.0, %v511
        %513 = vmatprep.mubr.bf16.mxu0 0
        %514 = vmatmul.mubr.bf16.gmra.mrb[0].mxu0 %v350
        %v515 = vpop.f32.mrb[0].mxu0
        %v516 = vadd.f32 0.0, %v515
        %v517 = vpop.f32.mrb[0].mxu0
        %v518 = vadd.f32 0.0, %v517
        %v519 = vpop.f32.mrb[0].mxu0
        %v520 = vadd.f32 0.0, %v519
        %v521 = vpop.f32.mrb[0].mxu0
        %v522 = vadd.f32 0.0, %v521
        %523 = vmatprep.mubr.bf16.mxu0 0
        %524 = vmatmul.mubr.bf16.gmra.mrb[0].mxu0 %v353
        %v525 = vpop.f32.mrb[0].mxu0
        %v526 = vadd.f32 0.0, %v525
        %v527 = vpop.f32.mrb[0].mxu0
        %v528 = vadd.f32 0.0, %v527
        %v529 = vpop.f32.mrb[0].mxu0
        %v530 = vadd.f32 0.0, %v529
        %v531 = vpop.f32.mrb[0].mxu0
        %v532 = vadd.f32 0.0, %v531
        %533 = vmatprep.mubr.bf16.mxu0 0
        %534 = vmatmul.mubr.bf16.gmra.mrb[0].mxu0 %v356
        %v535 = vpop.f32.mrb[0].mxu0
        %v536 = vadd.f32 0.0, %v535
        %v537 = vpop.f32.mrb[0].mxu0
        %v538 = vadd.f32 0.0, %v537
        %v539 = vpop.f32.mrb[0].mxu0
        %v540 = vadd.f32 0.0, %v539
        %v541 = vpop.f32.mrb[0].mxu0
        %v542 = vadd.f32 0.0, %v541
        %543 = vmatprep.mubr.bf16.mxu0 0
        %544 = vmatmul.mubr.bf16.gmra.mrb[0].mxu0 %v359
        %v545 = vpop.f32.mrb[0].mxu0
        %v546 = vadd.f32 0.0, %v545
        %v547 = vpop.f32.mrb[0].mxu0
        %v548 = vadd.f32 0.0, %v547
        %v549 = vpop.f32.mrb[0].mxu0
        %v550 = vadd.f32 0.0, %v549
        %v551 = vpop.f32.mrb[0].mxu0
        %v552 = vadd.f32 0.0, %v551
        %553 = vmatprep.mubr.bf16.mxu0 0
        %554 = vmatmul.mubr.bf16.gmra.mrb[0].mxu0 %v362
        %v555 = vpop.f32.mrb[0].mxu0
        %v556 = vadd.f32 0.0, %v555
        %v557 = vpop.f32.mrb[0].mxu0
        %v558 = vadd.f32 0.0, %v557
        %v559 = vpop.f32.mrb[0].mxu0
        %v560 = vadd.f32 0.0, %v559
        %v561 = vpop.f32.mrb[0].mxu0
        %v562 = vadd.f32 0.0, %v561
        %563 = vdwg.mxu0
        %v564 = vld [vmem:[%s2] sm:$0x1]
        %v566 = vlaneseq
        %v567 = vshrl.u32 %v566, 7
        %v568 = vsub.s32 0, %v567
        %v569 = vrot.slane %v564, %v568
        %v571 = vadd.f32 %v406, %v569
        %v572 = vadd.f32 %v410, %v569
        %v573 = vadd.f32 %v416, %v569
        %v574 = vadd.f32 %v420, %v569
        %v575 = vadd.f32 %v426, %v569
        %v576 = vadd.f32 %v430, %v569
        %v577 = vadd.f32 %v436, %v569
        %v578 = vadd.f32 %v440, %v569
        %v579 = vadd.f32 %v446, %v569
        %v580 = vadd.f32 %v450, %v569
        %v581 = vadd.f32 %v456, %v569
        %v582 = vadd.f32 %v460, %v569
        %v583 = vadd.f32 %v466, %v569
        %v584 = vadd.f32 %v470, %v569
        %v585 = vadd.f32 %v476, %v569
        %v586 = vadd.f32 %v480, %v569
        %v587 = vadd.f32 %v486, %v569
        %v588 = vadd.f32 %v490, %v569
        %v589 = vadd.f32 %v496, %v569
        %v590 = vadd.f32 %v500, %v569
        %v591 = vadd.f32 %v506, %v569
        %v592 = vadd.f32 %v510, %v569
        %v593 = vadd.f32 %v516, %v569
        %v594 = vadd.f32 %v520, %v569
        %v595 = vadd.f32 %v526, %v569
        %v596 = vadd.f32 %v530, %v569
        %v597 = vadd.f32 %v536, %v569
        %v598 = vadd.f32 %v540, %v569
        %v599 = vadd.f32 %v546, %v569
        %v600 = vadd.f32 %v550, %v569
        %v601 = vadd.f32 %v556, %v569
        %v602 = vadd.f32 %v560, %v569
        %vm603 = vcmp.gt.f32.partialorder %v571, 0.0
        %vm604 = vcmp.gt.f32.partialorder %v572, 0.0
        %vm605 = vcmp.gt.f32.partialorder %v573, 0.0
        %vm606 = vcmp.gt.f32.partialorder %v574, 0.0
        %vm607 = vcmp.gt.f32.partialorder %v575, 0.0
        %vm608 = vcmp.gt.f32.partialorder %v576, 0.0
        %vm609 = vcmp.gt.f32.partialorder %v577, 0.0
        %vm610 = vcmp.gt.f32.partialorder %v578, 0.0
        %vm611 = vcmp.gt.f32.partialorder %v579, 0.0
        %vm612 = vcmp.gt.f32.partialorder %v580, 0.0
        %vm613 = vcmp.gt.f32.partialorder %v581, 0.0
        %vm614 = vcmp.gt.f32.partialorder %v582, 0.0
        %vm615 = vcmp.gt.f32.partialorder %v583, 0.0
        %vm616 = vcmp.gt.f32.partialorder %v584, 0.0
        %vm617 = vcmp.gt.f32.partialorder %v585, 0.0
        %vm618 = vcmp.gt.f32.partialorder %v586, 0.0
        %vm619 = vcmp.gt.f32.partialorder %v587, 0.0
        %vm620 = vcmp.gt.f32.partialorder %v588, 0.0
        %vm621 = vcmp.gt.f32.partialorder %v589, 0.0
        %vm622 = vcmp.gt.f32.partialorder %v590, 0.0
        %vm623 = vcmp.gt.f32.partialorder %v591, 0.0
        %vm624 = vcmp.gt.f32.partialorder %v592, 0.0
        %vm625 = vcmp.gt.f32.partialorder %v593, 0.0
        %vm626 = vcmp.gt.f32.partialorder %v594, 0.0
        %vm627 = vcmp.gt.f32.partialorder %v595, 0.0
        %vm628 = vcmp.gt.f32.partialorder %v596, 0.0
        %vm629 = vcmp.gt.f32.partialorder %v597, 0.0
        %vm630 = vcmp.gt.f32.partialorder %v598, 0.0
        %vm631 = vcmp.gt.f32.partialorder %v599, 0.0
        %vm632 = vcmp.gt.f32.partialorder %v600, 0.0
        %vm633 = vcmp.gt.f32.partialorder %v601, 0.0
        %vm634 = vcmp.gt.f32.partialorder %v602, 0.0
        %v635 = vmul.f32 %v571, 0.2
        %v636 = vmul.f32 %v572, 0.2
        %v637 = vmul.f32 %v573, 0.2
        %v638 = vmul.f32 %v574, 0.2
        %v639 = vmul.f32 %v575, 0.2
        %v640 = vmul.f32 %v576, 0.2
        %v641 = vmul.f32 %v577, 0.2
        %v642 = vmul.f32 %v578, 0.2
        %v643 = vmul.f32 %v579, 0.2
        %v644 = vmul.f32 %v580, 0.2
        %v645 = vmul.f32 %v581, 0.2
        %v646 = vmul.f32 %v582, 0.2
        %v647 = vmul.f32 %v583, 0.2
        %v648 = vmul.f32 %v584, 0.2
        %v649 = vmul.f32 %v585, 0.2
        %v650 = vmul.f32 %v586, 0.2
        %v651 = vmul.f32 %v587, 0.2
        %v652 = vmul.f32 %v588, 0.2
        %v653 = vmul.f32 %v589, 0.2
        %v654 = vmul.f32 %v590, 0.2
        %v655 = vmul.f32 %v591, 0.2
        %v656 = vmul.f32 %v592, 0.2
        %v657 = vmul.f32 %v593, 0.2
        %v658 = vmul.f32 %v594, 0.2
        %v659 = vmul.f32 %v595, 0.2
        %v660 = vmul.f32 %v596, 0.2
        %v661 = vmul.f32 %v597, 0.2
        %v662 = vmul.f32 %v598, 0.2
        %v663 = vmul.f32 %v599, 0.2
        %v664 = vmul.f32 %v600, 0.2
        %v665 = vmul.f32 %v601, 0.2
        %v666 = vmul.f32 %v602, 0.2
        %v667 = vsel %vm603, %v571, %v635
        %v668 = vsel %vm604, %v572, %v636
        %v669 = vsel %vm605, %v573, %v637
        %v670 = vsel %vm606, %v574, %v638
        %v671 = vsel %vm607, %v575, %v639
        %v672 = vsel %vm608, %v576, %v640
        %v673 = vsel %vm609, %v577, %v641
        %v674 = vsel %vm610, %v578, %v642
        %v675 = vsel %vm611, %v579, %v643
        %v676 = vsel %vm612, %v580, %v644
        %v677 = vsel %vm613, %v581, %v645
        %v678 = vsel %vm614, %v582, %v646
        %v679 = vsel %vm615, %v583, %v647
        %v680 = vsel %vm616, %v584, %v648
        %v681 = vsel %vm617, %v585, %v649
        %v682 = vsel %vm618, %v586, %v650
        %v683 = vsel %vm619, %v587, %v651
        %v684 = vsel %vm620, %v588, %v652
        %v685 = vsel %vm621, %v589, %v653
        %v686 = vsel %vm622, %v590, %v654
        %v687 = vsel %vm623, %v591, %v655
        %v688 = vsel %vm624, %v592, %v656
        %v689 = vsel %vm625, %v593, %v657
        %v690 = vsel %vm626, %v594, %v658
        %v691 = vsel %vm627, %v595, %v659
        %v692 = vsel %vm628, %v596, %v660
        %v693 = vsel %vm629, %v597, %v661
        %v694 = vsel %vm630, %v598, %v662
        %v695 = vsel %vm631, %v599, %v663
        %v696 = vsel %vm632, %v600, %v664
        %v697 = vsel %vm633, %v601, %v665
        %v698 = vsel %vm634, %v602, %v666
        %v699 = vadd.f32 %v408, %v667
        %v700 = vadd.f32 %v412, %v668
        %v701 = vadd.f32 %v418, %v669
        %v702 = vadd.f32 %v422, %v670
        %v703 = vadd.f32 %v428, %v671
        %v704 = vadd.f32 %v432, %v672
        %v705 = vadd.f32 %v438, %v673
        %v706 = vadd.f32 %v442, %v674
        %v707 = vadd.f32 %v448, %v675
        %v708 = vadd.f32 %v452, %v676
        %v709 = vadd.f32 %v458, %v677
        %v710 = vadd.f32 %v462, %v678
        %v711 = vadd.f32 %v468, %v679
        %v712 = vadd.f32 %v472, %v680
        %v713 = vadd.f32 %v478, %v681
        %v714 = vadd.f32 %v482, %v682
        %v715 = vadd.f32 %v488, %v683
        %v716 = vadd.f32 %v492, %v684
        %v717 = vadd.f32 %v498, %v685
        %v718 = vadd.f32 %v502, %v686
        %v719 = vadd.f32 %v508, %v687
        %v720 = vadd.f32 %v512, %v688
        %v721 = vadd.f32 %v518, %v689
        %v722 = vadd.f32 %v522, %v690
        %v723 = vadd.f32 %v528, %v691
        %v724 = vadd.f32 %v532, %v692
        %v725 = vadd.f32 %v538, %v693
        %v726 = vadd.f32 %v542, %v694
        %v727 = vadd.f32 %v548, %v695
        %v728 = vadd.f32 %v552, %v696
        %v729 = vadd.f32 %v558, %v697
        %v730 = vadd.f32 %v562, %v698
        %731 = vst [vmem:[%s164] sm:$0xff] %v699
        %732 = vst [vmem:[%s164 + $0x8] sm:$0xff] %v700
        %733 = vst [vmem:[%s164 + $0x10] sm:$0xff] %v701
        %734 = vst [vmem:[%s164 + $0x18] sm:$0xff] %v702
        %735 = vst [vmem:[%s164 + $0x20] sm:$0xff] %v703
        %736 = vst [vmem:[%s164 + $0x28] sm:$0xff] %v704
        %737 = vst [vmem:[%s164 + $0x30] sm:$0xff] %v705
        %738 = vst [vmem:[%s164 + $0x38] sm:$0xff] %v706
        %739 = vst [vmem:[%s164 + $0x40] sm:$0xff] %v707
        %740 = vst [vmem:[%s164 + $0x48] sm:$0xff] %v708
        %741 = vst [vmem:[%s164 + $0x50] sm:$0xff] %v709
        %742 = vst [vmem:[%s164 + $0x58] sm:$0xff] %v710
        %743 = vst [vmem:[%s164 + $0x60] sm:$0xff] %v711
        %744 = vst [vmem:[%s164 + $0x68] sm:$0xff] %v712
        %745 = vst [vmem:[%s164 + $0x70] sm:$0xff] %v713
        %746 = vst [vmem:[%s164 + $0x78] sm:$0xff] %v714
        %747 = vst [vmem:[%s164 + $0x80] sm:$0xff] %v715
        %748 = vst [vmem:[%s164 + $0x88] sm:$0xff] %v716
        %749 = vst [vmem:[%s164 + $0x90] sm:$0xff] %v717
        %750 = vst [vmem:[%s164 + $0x98] sm:$0xff] %v718
        %751 = vst [vmem:[%s164 + $0xa0] sm:$0xff] %v719
        %752 = vst [vmem:[%s164 + $0xa8] sm:$0xff] %v720
        %753 = vst [vmem:[%s164 + $0xb0] sm:$0xff] %v721
        %754 = vst [vmem:[%s164 + $0xb8] sm:$0xff] %v722
        %755 = vst [vmem:[%s164 + $0xc0] sm:$0xff] %v723
        %756 = vst [vmem:[%s164 + $0xc8] sm:$0xff] %v724
        %757 = vst [vmem:[%s164 + $0xd0] sm:$0xff] %v725
        %758 = vst [vmem:[%s164 + $0xd8] sm:$0xff] %v726
        %759 = vst [vmem:[%s164 + $0xe0] sm:$0xff] %v727
        %760 = vst [vmem:[%s164 + $0xe8] sm:$0xff] %v728
        %761 = vst [vmem:[%s164 + $0xf0] sm:$0xff] %v729
        %762 = vst [vmem:[%s164 + $0xf8] sm:$0xff] %v730
        %s763 = sand.u32 %s93, 1
        %s764 = scalar_lea.sflag [#allocation3], %s763
        %s765 = sand.u32 %s93, 1
        %s766 = smul.addr %s765, 256
        %s767 = scalar_lea.vmem [#allocation2], %s766
        // Predicated region
        $region33: #{tpu_custom_call.1} parent=31 // pred_check
          %p768 = pneg %p103
        $region34: #{tpu_custom_call.1} parent=31 // pred_check_branch
          %770 = sbr.rel (%p768) target = $region36
        $region35: #{tpu_custom_call.1} parent=31 // pred_region
          %s771 = smul.u32 32, %s17
          %s773 = ssub.s32 4096, 4096
          %774 = vsyncadd %s764, %s773
          %s775 = smul.addr %s771, 128
          %s776 = scalar_lea.hbm %s3, %s775
          %s777 = sshll.u32 %s767, 4
          %s778 = int_to_ptr.vmem [resolvable:$true] %s777
          %783 = dma.vmem_to_hbm [thread:$0]  %s778, 4096, %s776, %s764, 128, 128, 8
        $region36: #{tpu_custom_call.1} parent=31 // pred_fallthru
          _
      $region32: #{tpu_custom_call.1} parent=5 // pred_fallthru
        _
      %p784 = scmp.le.s32.totalorder 2, %s12
      // Predicated region
      $region37: #{tpu_custom_call.1} parent=5 // pred_check
        %p785 = pneg %p784
      $region38: #{tpu_custom_call.1} parent=5 // pred_check_branch
        %787 = sbr.rel (%p785) target = $region40
      $region39: #{tpu_custom_call.1} parent=5 // pred_region
        %s788 = ssub.s32 %s12, 2
        // Predicated region
        $region41: #{tpu_custom_call.1} parent=39 // pred_check
          %p789 = pneg %p109
        $region42: #{tpu_custom_call.1} parent=39 // pred_check_branch
          %791 = sbr.rel (%p789) target = $region44
        $region43: #{tpu_custom_call.1} parent=39 // pred_region
          %s792 = sand.u32 %s94, 1
          %s793 = scalar_lea.sflag [#allocation3], %s792
          %s794 = sand.u32 %s94, 1
          %s795 = smul.addr %s794, 256
          %s796 = scalar_lea.vmem [#allocation2], %s795
          %797 = dma.done %s793, 4096
        $region44: #{tpu_custom_call.1} parent=39 // pred_fallthru
          _
      $region40: #{tpu_custom_call.1} parent=5 // pred_fallthru
        _
    $region6: #{tpu_custom_call.1} parent=1 // loop_footer
      %s16 = sadd.s32 1, %s12
    $region7: #{tpu_custom_call.1} parent=1 // loop_footer_branch
      %11 = sbr.rel target = $region3
    $region8: #{tpu_custom_call.1} parent=1 // loop_exit
      _
    %798 = vsyncpa [#allocation3], 1
    %s799 = scalar_lea.sflag [#allocation3], 1
    %800 = vsyncpa %s799, 1

</llo_original>
